<compile_context>
chip_gen: v5e
topology: v5e:2x2
jax: 0.10.0
libtpu: 0.0.40
codegen_flags: <defaults>
</compile_context>

<pallas_src>
import functools

import jax
import jax.numpy as jnp
from jax import lax
from jax.experimental import pallas as pl
from jax.experimental.pallas import tpu as pltpu


def _focal_kernel(gamma, hw, needs_mask, x_ref, t_ref, out_ref):
    x = x_ref[...].astype(jnp.float32)            # (C, LT) logits, classes on sublanes
    t = t_ref[...]                                # (1, LT) int32 targets
    c, lt = x.shape

    # numerically-stable softmax pieces (all reductions along the sublane axis)
    m = jnp.max(x, axis=0, keepdims=True)         # (1, LT)
    e = jnp.exp(x - m)                            # (C, LT)
    s = jnp.sum(e, axis=0, keepdims=True)         # (1, LT)

    # one-hot select of the target class (sublane broadcast of t)
    cls = lax.broadcasted_iota(jnp.int32, (c, lt), 0)
    onehot = cls == t
    x_t = jnp.sum(jnp.where(onehot, x, 0.0), axis=0, keepdims=True)   # target logit
    e_t = jnp.sum(jnp.where(onehot, e, 0.0), axis=0, keepdims=True)   # exp(x_t - m)

    ce = (m - x_t) + jnp.log(s)                   # per-pixel cross entropy, (1, LT)
    pt = e_t / s                                  # = exp(-ce), reuses exp(x - m)
    q = jnp.maximum(1.0 - pt, 0.0)                # clamp: pt can exceed 1 by an ulp

    g = float(gamma)
    if g == 2.0:                                  # common case: two VPU multiplies
        focal = q * q * ce
    elif g.is_integer() and g >= 0:
        focal = ce
        for _ in range(int(g)):
            focal = focal * q
    else:
        focal = (q ** g) * ce                     # non-integer gamma: fall back to pow

    if needs_mask:                                # static: only when HW % LANE_TILE != 0
        lane = lax.broadcasted_iota(jnp.int32, (1, lt), 1) + pl.program_id(1) * lt
        focal = jnp.where(lane < hw, focal, 0.0)

    # one cross-lane reduce per block -> independent (1,1) partial sum
    out_ref[...] = jnp.sum(focal, axis=1, keepdims=True)


def focal_loss(inputs, targets, gamma=2.0, lane_tile=2048):
    """Matches FocalLoss(gamma, weight=None).forward(inputs, targets)."""
    if inputs.ndim == 4:
        n, c, h, w = inputs.shape
        hw = h * w
        x = inputs.reshape(n, c, hw)                       # free: NCHW is contiguous as (N, C, HW)
        t = targets.reshape(n, 1, hw).astype(jnp.int32)
    elif inputs.ndim == 2:
        r, c = inputs.shape
        n, hw = 1, r
        x = jnp.transpose(inputs).reshape(1, c, r)         # small glue path; 4-D path is copy-free
        t = targets.reshape(1, 1, r).astype(jnp.int32)
    else:
        raise ValueError("focal_loss expects (N, C, H, W) or (R, C) inputs")

    # Lane tile: multiple of 128, large enough to amortize per-step overhead,
    # clamped so a double-buffered (C, LT) f32 block stays well inside scoped
    # VMEM even on v5e (16 MiB default).
    bytes_per_lane = c * 4
    max_lt = max(128, ((4 * 1024 * 1024) // bytes_per_lane) // 128 * 128)
    lt = min(lane_tile, max_lt)
    if hw <= lt:
        lt = hw                                            # full-extent block (any size allowed)
    num_blocks = pl.cdiv(hw, lt)
    needs_mask = (hw % lt) != 0

    kernel = functools.partial(_focal_kernel, gamma, hw, needs_mask)

    partials = pl.pallas_call(
        kernel,
        out_shape=jax.ShapeDtypeStruct((n, num_blocks, 1, 1), jnp.float32),
        grid_spec=pltpu.PrefetchScalarGridSpec(
            num_scalar_prefetch=0,
            grid=(n, num_blocks),
            in_specs=[
                pl.BlockSpec((None, c, lt), lambda b, j: (b, 0, j)),
                pl.BlockSpec((None, 1, lt), lambda b, j: (b, 0, j)),
            ],
            out_specs=pl.BlockSpec((None, None, 1, 1), lambda b, j: (b, j, 0, 0)),
        ),
        compiler_params=pltpu.CompilerParams(
            dimension_semantics=("parallel", "parallel")),
    )(x, t)

    return jnp.sum(partials) / (n * hw)


def _focal_loss_ref(inputs, targets, gamma=2.0):
    n, c, h, w = inputs.shape
    x = jnp.transpose(inputs, (0, 2, 3, 1)).reshape(-1, c).astype(jnp.float32)
    t = targets.reshape(-1).astype(jnp.int32)
    logz = jax.nn.logsumexp(x, axis=-1)
    ce = logz - jnp.take_along_axis(x, t[:, None], axis=-1)[:, 0]
    pt = jnp.exp(-ce)
    return jnp.mean((1.0 - pt) ** gamma * ce)


if __name__ == "__main__":
    key = jax.random.PRNGKey(0)
    k1, k2 = jax.random.split(key)

    # NCHW logits (batch=2, classes=4, spatial=16x16) and integer targets.
    x = jax.random.normal(k1, (2, 4, 16, 16), dtype=jnp.float32)
    t = jax.random.randint(k2, (2, 16, 16), 0, 4, dtype=jnp.int32)

    out = focal_loss(x, t, gamma=2.0)
    out = jax.block_until_ready(out)

    ref = _focal_loss_ref(x, t, gamma=2.0)
    assert jnp.allclose(out, ref, atol=1e-5, rtol=1e-5), (out, ref)

    print("KERNEL_OK")
</pallas_src>

<mosaic_0001>
module attributes {stable_mosaic.version = 11 : i64} {
  func.func @_focal_kernel(%arg0: i32, %arg1: i32, %arg2: memref<1x4x256xf32, #tpu.memory_space<vmem>>, %arg3: memref<1x1x256xi32, #tpu.memory_space<vmem>>, %arg4: memref<1x1x1x1xf32, #tpu.memory_space<vmem>>) attributes {dimension_semantics = [#tpu.dimension_semantics<parallel>, #tpu.dimension_semantics<parallel>], iteration_bounds = array<i64: 2, 1>, scalar_prefetch = 0 : i64, scratch_operands = 0 : i64, tpu.core_type = #tpu.core_type<tc>, window_params = [{transform_indices = @transform_0, window_bounds = array<i64: 1, 4, 256>}, {transform_indices = @transform_1, window_bounds = array<i64: 1, 1, 256>}, {transform_indices = @transform_2, window_bounds = array<i64: 1, 1, 1, 1>}]} {
    %c0 = arith.constant 0 : index
    %c0_0 = arith.constant 0 : index
    %c0_1 = arith.constant 0 : index
    %0 = vector.load %arg2[%c0, %c0_0, %c0_1] : memref<1x4x256xf32, #tpu.memory_space<vmem>>, vector<1x4x256xf32>
    %1 = vector.shape_cast %0 : vector<1x4x256xf32> to vector<4x256xf32>
    %c0_2 = arith.constant 0 : index
    %c0_3 = arith.constant 0 : index
    %c0_4 = arith.constant 0 : index
    %2 = vector.load %arg3[%c0_2, %c0_3, %c0_4] : memref<1x1x256xi32, #tpu.memory_space<vmem>>, vector<1x1x256xi32>
    %3 = vector.shape_cast %2 : vector<1x1x256xi32> to vector<1x256xi32>
    %cst = arith.constant dense<0xFF800000> : vector<256xf32>
    %4 = vector.multi_reduction <maximumf>, %1, %cst [0] : vector<4x256xf32> to vector<256xf32>
    %5 = vector.shape_cast %4 : vector<256xf32> to vector<1x256xf32>
    %6 = vector.broadcast %5 : vector<1x256xf32> to vector<4x256xf32>
    %7 = arith.subf %1, %6 : vector<4x256xf32>
    %8 = math.exp %7 : vector<4x256xf32>
    %cst_5 = arith.constant dense<0.000000e+00> : vector<256xf32>
    %9 = vector.multi_reduction <add>, %8, %cst_5 [0] : vector<4x256xf32> to vector<256xf32>
    %10 = vector.shape_cast %9 : vector<256xf32> to vector<1x256xf32>
    %11 = tpu.iota {dimensions = array<i32: 0>} : vector<4x256xi32>
    %12 = vector.broadcast %3 : vector<1x256xi32> to vector<4x256xi32>
    %13 = arith.cmpi eq, %11, %12 : vector<4x256xi32>
    %cst_6 = arith.constant 0.000000e+00 : f32
    %14 = vector.broadcast %cst_6 : f32 to vector<4x256xf32>
    %15 = arith.select %13, %1, %14 : vector<4x256xi1>, vector<4x256xf32>
    %cst_7 = arith.constant dense<0.000000e+00> : vector<256xf32>
    %16 = vector.multi_reduction <add>, %15, %cst_7 [0] : vector<4x256xf32> to vector<256xf32>
    %17 = vector.shape_cast %16 : vector<256xf32> to vector<1x256xf32>
    %cst_8 = arith.constant 0.000000e+00 : f32
    %18 = vector.broadcast %cst_8 : f32 to vector<4x256xf32>
    %19 = arith.select %13, %8, %18 : vector<4x256xi1>, vector<4x256xf32>
    %cst_9 = arith.constant dense<0.000000e+00> : vector<256xf32>
    %20 = vector.multi_reduction <add>, %19, %cst_9 [0] : vector<4x256xf32> to vector<256xf32>
    %21 = vector.shape_cast %20 : vector<256xf32> to vector<1x256xf32>
    %22 = arith.subf %5, %17 : vector<1x256xf32>
    %23 = math.log %10 : vector<1x256xf32>
    %24 = arith.addf %22, %23 : vector<1x256xf32>
    %25 = arith.divf %21, %10 : vector<1x256xf32>
    %cst_10 = arith.constant 1.000000e+00 : f32
    %26 = vector.broadcast %cst_10 : f32 to vector<1x256xf32>
    %27 = arith.subf %26, %25 : vector<1x256xf32>
    %cst_11 = arith.constant 0.000000e+00 : f32
    %28 = vector.broadcast %cst_11 : f32 to vector<1x256xf32>
    %29 = arith.maximumf %27, %28 : vector<1x256xf32>
    %30 = arith.mulf %29, %29 : vector<1x256xf32>
    %31 = arith.mulf %30, %24 : vector<1x256xf32>
    %cst_12 = arith.constant dense<0.000000e+00> : vector<1xf32>
    %32 = vector.multi_reduction <add>, %31, %cst_12 [1] : vector<1x256xf32> to vector<1xf32>
    %33 = vector.shape_cast %32 : vector<1xf32> to vector<1x1xf32>
    %c0_13 = arith.constant 0 : index
    %c0_14 = arith.constant 0 : index
    %c0_15 = arith.constant 0 : index
    %c0_16 = arith.constant 0 : index
    %34 = vector.load %arg4[%c0_13, %c0_14, %c0_15, %c0_16] : memref<1x1x1x1xf32, #tpu.memory_space<vmem>>, vector<1x1x1x1xf32>
    %35 = vector.shape_cast %34 : vector<1x1x1x1xf32> to vector<1x1xf32>
    %36 = vector.shape_cast %33 : vector<1x1xf32> to vector<1x1x1x1xf32>
    tpu.vector_store %arg4[%c0_13, %c0_14, %c0_15, %c0_16], %36 {strides = array<i32>} : memref<1x1x1x1xf32, #tpu.memory_space<vmem>>, vector<1x1x1x1xf32>,
    return
  }
  func.func @transform_0(%arg0: i32, %arg1: i32) -> (i32, i32, i32) {
    %c0_i32 = arith.constant 0 : i32
    %c0_i32_0 = arith.constant 0 : i32
    return %arg0, %c0_i32, %arg1 : i32, i32, i32
  }
  func.func @transform_1(%arg0: i32, %arg1: i32) -> (i32, i32, i32) {
    %c0_i32 = arith.constant 0 : i32
    %c0_i32_0 = arith.constant 0 : i32
    return %arg0, %c0_i32, %arg1 : i32, i32, i32
  }
  func.func @transform_2(%arg0: i32, %arg1: i32) -> (i32, i32, i32, i32) {
    %c0_i32 = arith.constant 0 : i32
    %c0_i32_0 = arith.constant 0 : i32
    %c0_i32_1 = arith.constant 0 : i32
    return %arg0, %arg1, %c0_i32, %c0_i32_0 : i32, i32, i32, i32
  }
}

</mosaic_0001>

<llo_original>
// kernel: tpu_custom_call.1
$region0: #{tpu_custom_call.1}
  #allocation0 [shape = 'u32[]', space=smem, size = 0x4, offset = 0x4, fixed_abs, tag = 'smem constant byte address 0x4 - core index']
  #allocation1 [shape = 'u32[72,128]{1,0:T(1,128)}', space=vmem, size = 0x9000, scoped, tag = 'internal scratch']
  %s0 = inlined_call_operand.hbm [shape: f32[2,4,256], index: 0, kind: input, shape index: {}]
  %s1 = inlined_call_operand.hbm [shape: s32[2,1,256], index: 1, kind: input, shape index: {}]
  %s2 = inlined_call_operand.vmem [shape: f32[2,1,1,1], index: 2, kind: output, shape index: {}]
  %s3 = sld [smem:[#allocation0]]
  $region49: #{tpu_custom_call.1} parent=0
    _
  %s5 = ssub.s32 1, %s3
  %s6 = scalar_select 0, %s5, %s3
  $region1: #{tpu_custom_call.1} parent=0
    #allocation2 [shape = 'u8[8192]{0}', space=vmem, size = 0x2000, scoped, tag = 'input window, operand 0']
    #allocation3 [shape = 's32[2]{0}', space=sflag, size = 0x8, scoped, tag = 'scoped memory for tpu_custom_call.1']
    #allocation4 [shape = 'u8[2048]{0}', space=vmem, size = 0x800, scoped, tag = 'input window, operand 1']
    #allocation5 [shape = 's32[2]{0}', space=sflag, size = 0x8, scoped, tag = 'scoped memory for tpu_custom_call.1']
    %7 = vsyncpa [#allocation3], 0
    %s8 = scalar_lea.sflag [#allocation3], 1
    %9 = vsyncpa %s8, 0
    %10 = vsyncpa [#allocation5], 0
    %s11 = scalar_lea.sflag [#allocation5], 1
    %12 = vsyncpa %s11, 0
    loop: start=0, step=1, limit=4
    $region2: #{tpu_custom_call.1} parent=1 // loop_pre_header
      _
    $region3: #{tpu_custom_call.1} parent=1 // loop_header
      %s14 = sphi 0, %s18
      %p15 = scmp.ge.s32.totalorder %s14, 4
      %s21 = sphi 0, %s33
      %s22 = sphi 0, %s29
      %s23 = sphi 0, %s21
      %s24 = sphi 0, %s22
      %s25 = sphi 0, %s23
      %s26 = sphi 0, %s24
      %s38 = sphi 0, %s40
      %s41 = sphi 0, %s38
      %s42 = sphi 0, %s41
      %s58 = sphi 0, %s42
      %s66 = sphi 0, %s68
      %s69 = sphi 0, %s66
      %s70 = sphi 0, %s69
      %s86 = sphi 0, %s70
      %s94 = sphi 0, %s96
      %s97 = sphi 0, %s94
      %s98 = sphi 0, %s97
      %s114 = sphi 0, %s98
    $region4: #{tpu_custom_call.1} parent=1 // loop_header_branch
      %17 = sbr.rel (%p15) target = $region8
    $region5: #{tpu_custom_call.1} parent=1 // loop_body
      %s19 = ssub.s32 %s14, 1
      %s20 = ssub.s32 %s14, 2
      %s27 = sadd.s32 1, %s22
      %p28 = scmp.ge.s32.totalorder %s27, 1
      %s29 = scalar_select %p28, 0, %s27
      %s30 = sadd.s32 1, %s21
      %s31 = scalar_select %p28, %s30, %s21
      %p32 = scmp.ge.s32.totalorder %s31, 2
      %s33 = scalar_select %p32, 0, %s31
      %s34 = ssub.s32 %s21, %s33
      %s35 = ssub.s32 %s22, %s29
      %s36 = sor.u32 %s34, %s35
      %p37 = scmp.eq.s32.totalorder %s36, 0
      %s39 = sadd.s32 %s38, 1
      %s40 = scalar_select %p37, %s38, %s39
      %p43 = pneg %p37
      %p44 = scmp.eq.s32.totalorder %s14, 1
      %p45 = por %p43, %p44
      %p46 = scmp.ne.s32.totalorder %s38, %s41
      %p47 = scmp.eq.s32.totalorder %s14, 0
      %p48 = por %p46, %p47
      %p49 = scmp.ne.s32.totalorder %s38, %s41
      %p50 = scmp.eq.s32.totalorder %s19, 1
      %p51 = por %p49, %p50
      %p52 = scmp.ne.s32.totalorder %s41, %s42
      %p53 = scmp.eq.s32.totalorder %s19, 0
      %p54 = por %p52, %p53
      %p55 = scmp.ne.s32.totalorder %s41, %s42
      %p56 = scmp.eq.s32.totalorder %s20, 1
      %p57 = por %p55, %p56
      %p59 = scmp.ne.s32.totalorder %s42, %s58
      %p60 = scmp.eq.s32.totalorder %s20, 0
      %p61 = por %p59, %p60
      %s62 = ssub.s32 %s21, %s33
      %s63 = ssub.s32 %s22, %s29
      %s64 = sor.u32 %s62, %s63
      %p65 = scmp.eq.s32.totalorder %s64, 0
      %s67 = sadd.s32 %s66, 1
      %s68 = scalar_select %p65, %s66, %s67
      %p71 = pneg %p65
      %p72 = scmp.eq.s32.totalorder %s14, 1
      %p73 = por %p71, %p72
      %p74 = scmp.ne.s32.totalorder %s66, %s69
      %p75 = scmp.eq.s32.totalorder %s14, 0
      %p76 = por %p74, %p75
      %p77 = scmp.ne.s32.totalorder %s66, %s69
      %p78 = scmp.eq.s32.totalorder %s19, 1
      %p79 = por %p77, %p78
      %p80 = scmp.ne.s32.totalorder %s69, %s70
      %p81 = scmp.eq.s32.totalorder %s19, 0
      %p82 = por %p80, %p81
      %p83 = scmp.ne.s32.totalorder %s69, %s70
      %p84 = scmp.eq.s32.totalorder %s20, 1
      %p85 = por %p83, %p84
      %p87 = scmp.ne.s32.totalorder %s70, %s86
      %p88 = scmp.eq.s32.totalorder %s20, 0
      %p89 = por %p87, %p88
      %s90 = ssub.s32 %s21, %s33
      %s91 = ssub.s32 %s22, %s29
      %s92 = sor.u32 %s90, %s91
      %p93 = scmp.eq.s32.totalorder %s92, 0
      %s95 = sadd.s32 %s94, 1
      %s96 = scalar_select %p93, %s94, %s95
      %p99 = pneg %p93
      %p100 = scmp.eq.s32.totalorder %s14, 1
      %p101 = por %p99, %p100
      %p102 = scmp.ne.s32.totalorder %s94, %s97
      %p103 = scmp.eq.s32.totalorder %s14, 0
      %p104 = por %p102, %p103
      %p105 = scmp.ne.s32.totalorder %s94, %s97
      %p106 = scmp.eq.s32.totalorder %s19, 1
      %p107 = por %p105, %p106
      %p108 = scmp.ne.s32.totalorder %s97, %s98
      %p109 = scmp.eq.s32.totalorder %s19, 0
      %p110 = por %p108, %p109
      %p111 = scmp.ne.s32.totalorder %s97, %s98
      %p112 = scmp.eq.s32.totalorder %s20, 1
      %p113 = por %p111, %p112
      %p115 = scmp.ne.s32.totalorder %s98, %s114
      %p116 = scmp.eq.s32.totalorder %s20, 0
      %p117 = por %p115, %p116
      %p118 = scmp.le.s32.totalorder 1, %s14
      %p119 = scmp.lt.s32.totalorder %s14, 3
      %p120 = pnand %p118, %p119
      %p121 = pneg %p120
      // Predicated region
      $region9: #{tpu_custom_call.1} parent=5 // pred_check
        _
      $region10: #{tpu_custom_call.1} parent=5 // pred_check_branch
        %123 = sbr.rel (%p120) target = $region12
      $region11: #{tpu_custom_call.1} parent=5 // pred_region
        %s124 = ssub.s32 %s14, 1
      $region12: #{tpu_custom_call.1} parent=5 // pred_fallthru
        _
      %p125 = scmp.lt.s32.totalorder %s14, 2
      // Predicated region
      $region13: #{tpu_custom_call.1} parent=5 // pred_check
        %p126 = pneg %p125
      $region14: #{tpu_custom_call.1} parent=5 // pred_check_branch
        %128 = sbr.rel (%p126) target = $region16
      $region15: #{tpu_custom_call.1} parent=5 // pred_region
        // Predicated region
        $region17: #{tpu_custom_call.1} parent=15 // pred_check
          %p129 = pneg %p48
        $region18: #{tpu_custom_call.1} parent=15 // pred_check_branch
          %131 = sbr.rel (%p129) target = $region20
        $region19: #{tpu_custom_call.1} parent=15 // pred_region
          %s132 = sand.u32 %s38, 1
          %s133 = scalar_lea.sflag [#allocation3], %s132
          %s134 = sand.u32 %s38, 1
          %s135 = smul.addr %s134, 8
          %s136 = scalar_lea.vmem [#allocation2], %s135
          %s137 = smul.u32 2, %s22
          %139 = vsyncadd %s133, 0
          %s140 = smul.addr %s21, 2
          %s141 = sadd.s32 %s137, %s140
          %s142 = smul.addr %s141, 4
          %s143 = scalar_lea.hbm %s0, %s142
          %s145 = sshll.u32 %s143, 4
          %s146 = int_to_ptr.hbm [resolvable:$true] %s145
          %s147 = sshll.u32 %s136, 4
          %s148 = int_to_ptr.vmem [resolvable:$true] %s147
          %150 = dma.hbm_to_vmem [thread:$0]  %s146, 128, %s148, %s133
        $region20: #{tpu_custom_call.1} parent=15 // pred_fallthru
          _
        // Predicated region
        $region21: #{tpu_custom_call.1} parent=15 // pred_check
          %p151 = pneg %p76
        $region22: #{tpu_custom_call.1} parent=15 // pred_check_branch
          %153 = sbr.rel (%p151) target = $region24
        $region23: #{tpu_custom_call.1} parent=15 // pred_region
          %s154 = sand.u32 %s66, 1
          %s155 = scalar_lea.sflag [#allocation5], %s154
          %s156 = sand.u32 %s66, 1
          %s157 = smul.addr %s156, 2
          %s158 = scalar_lea.vmem [#allocation4], %s157
          %s159 = smul.u32 2, %s22
          %161 = vsyncadd %s155, 0
          %s162 = smul.addr %s21, 2
          %s163 = sadd.s32 %s159, %s162
          %s164 = scalar_lea.hbm %s1, %s163
          %s166 = sshll.u32 %s164, 4
          %s167 = int_to_ptr.hbm [resolvable:$true] %s166
          %s168 = sshll.u32 %s158, 4
          %s169 = int_to_ptr.vmem [resolvable:$true] %s168
          %171 = dma.hbm_to_vmem [thread:$0]  %s167, 32, %s169, %s155
        $region24: #{tpu_custom_call.1} parent=15 // pred_fallthru
          _
      $region16: #{tpu_custom_call.1} parent=5 // pred_fallthru
        _
      %p172 = scmp.le.s32.totalorder 1, %s14
      %p173 = scmp.lt.s32.totalorder %s14, 3
      %p174 = pnand %p172, %p173
      %p175 = pneg %p174
      // Predicated region
      $region25: #{tpu_custom_call.1} parent=5 // pred_check
        _
      $region26: #{tpu_custom_call.1} parent=5 // pred_check_branch
        %177 = sbr.rel (%p174) target = $region28
      $region27: #{tpu_custom_call.1} parent=5 // pred_region
        %s178 = ssub.s32 %s14, 1
        %s179 = sand.u32 %s41, 1
        %s180 = scalar_lea.sflag [#allocation3], %s179
        %s181 = sand.u32 %s41, 1
        %s182 = smul.addr %s181, 8
        %s183 = scalar_lea.vmem [#allocation2], %s182
        // Predicated region
        $region29: #{tpu_custom_call.1} parent=27 // pred_check
          %p184 = pneg %p54
        $region30: #{tpu_custom_call.1} parent=27 // pred_check_branch
          %186 = sbr.rel (%p184) target = $region32
        $region31: #{tpu_custom_call.1} parent=27 // pred_region
          %188 = dma.done %s180, 128
        $region32: #{tpu_custom_call.1} parent=27 // pred_fallthru
          _
        %s189 = sand.u32 %s69, 1
        %s190 = scalar_lea.sflag [#allocation5], %s189
        %s191 = sand.u32 %s69, 1
        %s192 = smul.addr %s191, 2
        %s193 = scalar_lea.vmem [#allocation4], %s192
        // Predicated region
        $region33: #{tpu_custom_call.1} parent=27 // pred_check
          %p194 = pneg %p82
        $region34: #{tpu_custom_call.1} parent=27 // pred_check_branch
          %196 = sbr.rel (%p194) target = $region36
        $region35: #{tpu_custom_call.1} parent=27 // pred_region
          %198 = dma.done %s190, 32
        $region36: #{tpu_custom_call.1} parent=27 // pred_fallthru
          _
        %s199 = sand.u32 %s41, 1
        %s200 = scalar_lea.sflag [#allocation3], %s199
        %s201 = sand.u32 %s41, 1
        %s202 = smul.addr %s201, 8
        %s203 = scalar_lea.vmem [#allocation2], %s202
        %p204 = pneg %p54
        %p205 = pneg %p51
        %s206 = sand.u32 %s69, 1
        %s207 = scalar_lea.sflag [#allocation5], %s206
        %s208 = sand.u32 %s69, 1
        %s209 = smul.addr %s208, 2
        %s210 = scalar_lea.vmem [#allocation4], %s209
        %p211 = pneg %p82
        %p212 = pneg %p79
        %p213 = pneg %p110
        %p214 = pneg %p107
        %p215 = scmp.lt.s32.totalorder %s23, 1
        %s216 = scalar_select %p215, %s23, 1
        %p217 = scmp.lt.s32.totalorder %s24, 0
        %s218 = scalar_select %p217, %s24, 0
        %s219 = sadd.s32 %s218, %s216
        %s220 = scalar_lea.vmem %s2, %s219
        %s221 = smul.u32 2, %s24
        %s222 = smul.u32 2, %s24
        %p223 = scmp.lt.s32.totalorder %s23, 1
        %s224 = scalar_select %p223, %s23, 1
        %p225 = scmp.lt.s32.totalorder %s24, 0
        %s226 = scalar_select %p225, %s24, 0
        %s227 = sadd.s32 %s226, %s224
        %s228 = scalar_lea.vmem %s2, %s227
        %v229 = vld [vmem:[%s183] sm:$0xff]
        %v230 = vld [vmem:[%s193] sm:$0x3]
        %232 = vst [vmem:[#allocation1] ss:$2 sm:$0xff] %v229
        %v233 = vld.sshfl [vmem:[#allocation1] sm:$0xff pattern:$0x75316420]
        %v234 = vld.sshfl [vmem:[#allocation1 + $0x8] sm:$0xff pattern:$0x75316420]
        %vm237 = vcmask 1043456
        %v238 = vsel %vm237, %v233, -inf
        %v239 = vrot.slane %v238, 4
        %v240 = vmax.f32 %v238, %v239
        %v241 = vrot.slane %v240, 2
        %v242 = vmax.f32 %v240, %v241
        %v243 = vrot.slane %v242, 1
        %v244 = vmax.f32 %v242, %v243
        %v245 = vsel %vm237, %v234, -inf
        %v246 = vrot.slane %v245, 4
        %v247 = vmax.f32 %v245, %v246
        %v248 = vrot.slane %v247, 2
        %v249 = vmax.f32 %v247, %v248
        %v250 = vrot.slane %v249, 1
        %v251 = vmax.f32 %v249, %v250
        %v254 = vrot.slane %v251, 4
        %v255 = vsel %vm237, %v244, %v254
        %v257 = vsub.f32 %v229, %v255
        %v258 = vmul.f32 %v257, 1.442695
        %v259 = vpow.pop %v258
        %261 = vst [vmem:[#allocation1] ss:$2 sm:$0xff] %v259
        %v262 = vld.sshfl [vmem:[#allocation1] sm:$0xff pattern:$0x75316420]
        %v263 = vld.sshfl [vmem:[#allocation1 + $0x8] sm:$0xff pattern:$0x75316420]
        %v266 = vsel %vm237, %v262, 0.0
        %v267 = vrot.slane %v266, 4
        %v268 = vadd.f32 %v266, %v267
        %v269 = vrot.slane %v268, 2
        %v270 = vadd.f32 %v268, %v269
        %v271 = vrot.slane %v270, 1
        %v272 = vadd.f32 %v270, %v271
        %v273 = vsel %vm237, %v263, 0.0
        %v274 = vrot.slane %v273, 4
        %v275 = vadd.f32 %v273, %v274
        %v276 = vrot.slane %v275, 2
        %v277 = vadd.f32 %v275, %v276
        %v278 = vrot.slane %v277, 1
        %v279 = vadd.f32 %v277, %v278
        %v280 = vlaneseq
        %v281 = vshrl.u32 %v280, 7
        %v282 = vperm.slane %v230, 0
        %v283 = vperm.slane %v230, 1
        %vm284 = vcmp.eq.s32.totalorder %v281, %v282
        %vm285 = vcmp.eq.s32.totalorder %v281, %v283
        %286 = vst [vmem:[#allocation1] ss:$2 sm:$0xff] %v229
        %v287 = vld.sshfl [vmem:[#allocation1] sm:$0xff pattern:$0x75316420]
        %v288 = vld.sshfl [vmem:[#allocation1 + $0x8] sm:$0xff pattern:$0x75316420]
        %v291 = vsel %vm284, %v287, 0.0
        %v292 = vsel %vm285, %v288, 0.0
        %v293 = vsel %vm237, %v291, 0.0
        %v294 = vrot.slane %v293, 4
        %v295 = vadd.f32 %v293, %v294
        %v296 = vrot.slane %v295, 2
        %v297 = vadd.f32 %v295, %v296
        %v298 = vrot.slane %v297, 1
        %v299 = vadd.f32 %v297, %v298
        %v300 = vsel %vm237, %v292, 0.0
        %v301 = vrot.slane %v300, 4
        %v302 = vadd.f32 %v300, %v301
        %v303 = vrot.slane %v302, 2
        %v304 = vadd.f32 %v302, %v303
        %v305 = vrot.slane %v304, 1
        %v306 = vadd.f32 %v304, %v305
        %307 = vst [vmem:[#allocation1] ss:$2 sm:$0xff] %v259
        %v308 = vld.sshfl [vmem:[#allocation1] sm:$0xff pattern:$0x75316420]
        %v309 = vld.sshfl [vmem:[#allocation1 + $0x8] sm:$0xff pattern:$0x75316420]
        %v312 = vsel %vm284, %v308, 0.0
        %v313 = vsel %vm285, %v309, 0.0
        %v314 = vsel %vm237, %v312, 0.0
        %v315 = vrot.slane %v314, 4
        %v316 = vadd.f32 %v314, %v315
        %v317 = vrot.slane %v316, 2
        %v318 = vadd.f32 %v316, %v317
        %v319 = vrot.slane %v318, 1
        %v320 = vadd.f32 %v318, %v319
        %v321 = vsel %vm237, %v313, 0.0
        %v322 = vrot.slane %v321, 4
        %v323 = vadd.f32 %v321, %v322
        %v324 = vrot.slane %v323, 2
        %v325 = vadd.f32 %v323, %v324
        %v326 = vrot.slane %v325, 1
        %v327 = vadd.f32 %v325, %v326
        %v328 = vsub.f32 %v244, %v299
        %v329 = vsub.f32 %v251, %v306
        %v330 = vlog2.pop %v272
        %v331 = vmul.f32 %v330, 0.6931472
        %v332 = vlog2.pop %v279
        %v333 = vmul.f32 %v332, 0.6931472
        %v334 = vadd.f32 %v328, %v331
        %v335 = vadd.f32 %v329, %v333
        %v336 = vrcp.pop %v272
        %v337 = vmul.f32 %v272, %v336
        %v338 = vsub.f32 1.0, %v337
        %v339 = vmul.f32 %v336, %v338
        %v340 = vadd.f32 %v336, %v339
        %vm341 = vweird.f32 %v272
        %vm342 = vweird.f32 %v336
        %vm343 = vmor %vm341, %vm342
        %v344 = vsel %vm343, %v336, %v340
        %v345 = vand.u32 2147483647, %v272
        %vm346 = vcmp.eq.f32.partialorder %v345, 8.507059e+37
        %v347 = vand.u32 %v272, 2147483648
        %v348 = vor.u32 1.1754944e-38, %v347
        %v349 = vsel %vm346, %v348, %v344
        %v350 = vmul.f32 %v320, %v349
        %v351 = vrcp.pop %v279
        %v352 = vmul.f32 %v279, %v351
        %v353 = vsub.f32 1.0, %v352
        %v354 = vmul.f32 %v351, %v353
        %v355 = vadd.f32 %v351, %v354
        %vm356 = vweird.f32 %v279
        %vm357 = vweird.f32 %v351
        %vm358 = vmor %vm356, %vm357
        %v359 = vsel %vm358, %v351, %v355
        %v360 = vand.u32 2147483647, %v279
        %vm361 = vcmp.eq.f32.partialorder %v360, 8.507059e+37
        %v362 = vand.u32 %v279, 2147483648
        %v363 = vor.u32 1.1754944e-38, %v362
        %v364 = vsel %vm361, %v363, %v359
        %v365 = vmul.f32 %v327, %v364
        %v366 = vsub.f32 1.0, %v350
        %v367 = vsub.f32 1.0, %v365
        %v368 = vmax.f32 %v366, 0.0
        %v369 = vmax.f32 %v367, 0.0
        %v370 = vmul.f32 %v368, %v368
        %v371 = vmul.f32 %v369, %v369
        %v372 = vmul.f32 %v370, %v334
        %v373 = vmul.f32 %v371, %v335
        %v374 = vadd.f32 %v372, %v373
        %375 = vadd.xlane.f32.xlu0 %v374
        %v376 = vpop.xlane.xlu0 %375
        %vm377 = vcmask 0
        %378 = vst.msk [vmem:[%s228] sm:$0x1] %vm377, %v376
        %p379 = scmp.lt.s32.totalorder %s23, 1
        %s380 = scalar_select %p379, %s23, 1
        %p381 = scmp.lt.s32.totalorder %s24, 0
        %s382 = scalar_select %p381, %s24, 0
        %s383 = sadd.s32 %s382, %s380
        %s384 = scalar_lea.vmem %s2, %s383
        // Predicated region
        $region37: #{tpu_custom_call.1} parent=27 // pred_check
          %p385 = pneg %p107
        $region38: #{tpu_custom_call.1} parent=27 // pred_check_branch
          %387 = sbr.rel (%p385) target = $region40
        $region39: #{tpu_custom_call.1} parent=27 // pred_region
          _
        $region40: #{tpu_custom_call.1} parent=27 // pred_fallthru
          _
      $region28: #{tpu_custom_call.1} parent=5 // pred_fallthru
        _
      %p388 = scmp.le.s32.totalorder 2, %s14
      // Predicated region
      $region41: #{tpu_custom_call.1} parent=5 // pred_check
        %p389 = pneg %p388
      $region42: #{tpu_custom_call.1} parent=5 // pred_check_branch
        %391 = sbr.rel (%p389) target = $region44
      $region43: #{tpu_custom_call.1} parent=5 // pred_region
        %s392 = ssub.s32 %s14, 2
        // Predicated region
        $region45: #{tpu_custom_call.1} parent=43 // pred_check
          %p393 = pneg %p113
        $region46: #{tpu_custom_call.1} parent=43 // pred_check_branch
          %395 = sbr.rel (%p393) target = $region48
        $region47: #{tpu_custom_call.1} parent=43 // pred_region
          %p396 = scmp.lt.s32.totalorder %s25, 1
          %s397 = scalar_select %p396, %s25, 1
          %p398 = scmp.lt.s32.totalorder %s26, 0
          %s399 = scalar_select %p398, %s26, 0
          %s400 = sadd.s32 %s399, %s397
          %s401 = scalar_lea.vmem %s2, %s400
        $region48: #{tpu_custom_call.1} parent=43 // pred_fallthru
          _
      $region44: #{tpu_custom_call.1} parent=5 // pred_fallthru
        _
    $region6: #{tpu_custom_call.1} parent=1 // loop_footer
      %s18 = sadd.s32 1, %s14
    $region7: #{tpu_custom_call.1} parent=1 // loop_footer_branch
      %13 = sbr.rel target = $region3
    $region8: #{tpu_custom_call.1} parent=1 // loop_exit
      _
    %402 = vsyncpa [#allocation3], 1
    %s403 = scalar_lea.sflag [#allocation3], 1
    %404 = vsyncpa %s403, 1
    %405 = vsyncpa [#allocation5], 1
    %s406 = scalar_lea.sflag [#allocation5], 1
    %407 = vsyncpa %s406, 1

</llo_original>
